<compile_context>
chip_gen: v5e
topology: v5e:2x2
jax: 0.10.0
libtpu: 0.0.40
codegen_flags: <defaults>
</compile_context>

<pallas_src>
import functools

import jax
import jax.numpy as jnp
from jax import lax
from jax.experimental import pallas as pl
from jax.experimental.pallas import tpu as pltpu


def _round_up(x, m):
    return (x + m - 1) // m * m


def sae_kernel(x_ref, w_ref, b_enc_ref, b_dec_ref, xhat_ref, f_ref, *scratch,
               use_acc):
    # x_ref:     (tb, Dp)  batch tile of inputs (compute dtype, e.g. bf16)
    # w_ref:     (Dp, th)  hidden-tile of the tied weight (compute dtype)
    # b_enc_ref: (1,  th)  encoder bias tile (f32)
    # b_dec_ref: (1,  Dp)  decoder bias (f32)
    # xhat_ref:  (tb, Dp)  output tile (resident over h)
    # f_ref:     (tb, th)  feature output tile
    # scratch:   optional (tb, Dp) f32 accumulator (only when output != f32)
    h = pl.program_id(1)
    acc_ref = scratch[0] if use_acc else xhat_ref  # f32 either way

    @pl.when(h == 0)
    def _():
        acc_ref[...] = jnp.zeros_like(acc_ref)

    w = w_ref[...]

    # encode: relu(x @ w + b_enc)  -- bf16 MXU inputs, f32 accumulation.
    f = jnp.dot(x_ref[...], w, preferred_element_type=jnp.float32) + b_enc_ref[...]
    f = jnp.maximum(f, 0.0)
    f_ref[...] = f.astype(f_ref.dtype)

    # decode partial: f @ w.T expressed as a hidden-axis contraction of both
    # operands -> MXU consumes w in its existing (Dp, th) layout (no vxpose,
    # no extra VMEM copy).  f is cast down to the compute dtype for the MXU.
    acc_ref[...] += lax.dot_general(
        f.astype(w.dtype), w,
        dimension_numbers=(((1,), (1,)), ((), ())),
        preferred_element_type=jnp.float32,
    ).astype(acc_ref.dtype)

    @pl.when(h == pl.num_programs(1) - 1)
    def _():
        xhat_ref[...] = (acc_ref[...] + b_dec_ref[...]).astype(xhat_ref.dtype)


def sae_forward(x, w, b_enc, b_dec, *, compute_dtype=jnp.bfloat16):
    """Returns (x_hat, f), matching SAE.forward(x)."""
    B, D = x.shape
    H = w.shape[1]
    out_dtype = x.dtype
    use_acc = jnp.dtype(out_dtype) != jnp.dtype(jnp.float32)

    cs = jnp.dtype(compute_dtype).itemsize
    os = jnp.dtype(out_dtype).itemsize

    # ---- VMEM budget (generation-aware) ---------------------------------
    try:
        vmem_cap = pltpu.get_tpu_info().vmem_capacity_bytes
    except Exception:
        vmem_cap = 64 * 1024 * 1024          # conservative (v7x per-TC)
    vmem_limit = min(int(vmem_cap * 0.85), 112 * 1024 * 1024)
    budget = max(vmem_limit - 6 * 1024 * 1024, 8 * 1024 * 1024)

    Dp = _round_up(D, 128)                   # lane-dense x_hat / weight rows
    h_cap = _round_up(H, 128)

    def vmem_use(tb_, th_):
        use = 2 * tb_ * Dp * cs              # x tile (double-buffered)
        use += 2 * Dp * th_ * cs             # weight tile (double-buffered)
        use += 2 * tb_ * Dp * os             # x_hat output tile
        use += 2 * tb_ * th_ * os            # f output tile
        use += 2 * (th_ + Dp) * 4            # bias tiles
        if use_acc:
            use += tb_ * Dp * 4              # f32 accumulator scratch
        return use

    # ---- tile sizes ------------------------------------------------------
    # Batch tile: 512 keeps the kernel MXU-bound vs. the bf16 weight stream
    # on v6e/v7x; clamp for small batches but keep >=2 programs so the
    # "parallel" axis actually splits across v7x's two TensorCores.
    tb = min(512, _round_up(B, 8))
    if B > 8 and _round_up(B, tb) // tb < 2:
        tb = max(8, _round_up((B + 1) // 2, 8))

    # Hidden tile: largest multiple of 128 (<=1024) that fits the VMEM budget;
    # shrink the batch tile if even th=128 does not fit (large D on v7x).
    th = None
    while th is None:
        for cand in (1024, 512, 256, 128):
            cand = min(cand, h_cap)
            if vmem_use(tb, cand) <= budget:
                th = cand
                break
        if th is None:
            if tb <= 8:
                th = min(128, h_cap)         # last resort
            else:
                tb = max(8, tb // 2)

    Bp = _round_up(B, tb)
    Hp = _round_up(H, th)

    # ---- zero-pad operands (zeros are exact no-ops for this linear model) -
    xp = x if (Bp, Dp) == (B, D) else jnp.zeros((Bp, Dp), x.dtype).at[:B, :D].set(x)
    wp = w if (Dp, Hp) == (D, H) else jnp.zeros((Dp, Hp), w.dtype).at[:D, :H].set(w)
    xp = xp.astype(compute_dtype)            # bf16 MXU operands, cast once
    wp = wp.astype(compute_dtype)
    be = b_enc.reshape(1, H).astype(jnp.float32)
    be = be if Hp == H else jnp.zeros((1, Hp), jnp.float32).at[:, :H].set(be)
    bd = b_dec.reshape(1, D).astype(jnp.float32)
    bd = bd if Dp == D else jnp.zeros((1, Dp), jnp.float32).at[:, :D].set(bd)

    grid = (Bp // tb, Hp // th)

    # Truthful HBM traffic: the weight is re-streamed once per batch tile.
    cost = pl.CostEstimate(
        flops=4 * Bp * Dp * Hp,                       # two matmuls
        transcendentals=0,
        bytes_accessed=(Bp * Dp * cs                  # x read
                        + grid[0] * Dp * Hp * cs      # w read per batch tile
                        + Bp * Hp * os                # f written
                        + Bp * Dp * os),              # x_hat written
    )

    scratch_shapes = [pltpu.VMEM((tb, Dp), jnp.float32)] if use_acc else []

    x_hat, f = pl.pallas_call(
        functools.partial(sae_kernel, use_acc=use_acc),
        out_shape=(
            jax.ShapeDtypeStruct((Bp, Dp), out_dtype),   # x_hat
            jax.ShapeDtypeStruct((Bp, Hp), out_dtype),   # f
        ),
        grid_spec=pltpu.PrefetchScalarGridSpec(
            num_scalar_prefetch=0,
            grid=grid,                                   # (batch tiles, hidden tiles)
            in_specs=[
                pl.BlockSpec((tb, Dp), lambda i, h: (i, 0)),   # x tile
                pl.BlockSpec((Dp, th), lambda i, h: (0, h)),   # weight tile (streamed over h)
                pl.BlockSpec((1, th),  lambda i, h: (0, h)),   # encoder bias tile
                pl.BlockSpec((1, Dp),  lambda i, h: (0, 0)),   # decoder bias
            ],
            out_specs=[
                pl.BlockSpec((tb, Dp), lambda i, h: (i, 0)),   # x_hat (resident over h)
                pl.BlockSpec((tb, th), lambda i, h: (i, h)),   # f tile
            ],
            scratch_shapes=scratch_shapes,
        ),
        compiler_params=pltpu.CompilerParams(
            # batch axis shards across TensorCores (megacore);
            # hidden axis carries the accumulator -> must be "arbitrary".
            dimension_semantics=("parallel", "arbitrary"),
            vmem_limit_bytes=vmem_limit,
        ),
        cost_estimate=cost,
    )(xp, wp, be, bd)

    # Slice padding back off (no-op when shapes were already aligned).
    return x_hat[:B, :D], f[:B, :H]


if __name__ == "__main__":
    # Small, deterministic synthetic setup (no checkpoint loading).
    INPUT_SIZE = 32     # config.input_size
    HIDDEN_SIZE = 128   # config.hidden_size
    BATCH = 16

    key = jax.random.PRNGKey(0)
    k_w, k_x = jax.random.split(key)

    # Deterministic Anthropic-style init: column-normalized gaussian * 0.1,
    # tied encoder/decoder weights, zero biases.
    w = jax.random.normal(k_w, (INPUT_SIZE, HIDDEN_SIZE), dtype=jnp.float32)
    w = w / jnp.linalg.norm(w, axis=0, keepdims=True) * 0.1
    b_enc = jnp.zeros((HIDDEN_SIZE,), dtype=jnp.float32)
    b_dec = jnp.zeros((INPUT_SIZE,), dtype=jnp.float32)

    x = jax.random.normal(k_x, (BATCH, INPUT_SIZE), dtype=jnp.float32)

    x_hat, f = sae_forward(x, w, b_enc, b_dec)
    jax.block_until_ready((x_hat, f))

    # Pure-JAX f32 reference of the forward semantics.  The kernel runs the
    # matmuls with bf16 operands / f32 accumulation, so tolerances are loose.
    f_ref = jnp.maximum(x @ w + b_enc, 0.0)
    x_hat_ref = f_ref @ w.T + b_dec
    assert f.shape == f_ref.shape and x_hat.shape == x_hat_ref.shape
    assert jnp.allclose(f, f_ref, atol=2e-2, rtol=2e-2)
    assert jnp.allclose(x_hat, x_hat_ref, atol=2e-2, rtol=2e-2)

    print("KERNEL_OK")
</pallas_src>

<mosaic_0001>
module attributes {stable_mosaic.version = 11 : i64} {
  func.func @sae_kernel(%arg0: i32, %arg1: i32, %arg2: memref<8x128xbf16, #tpu.memory_space<vmem>>, %arg3: memref<128x128xbf16, #tpu.memory_space<vmem>>, %arg4: memref<1x128xf32, #tpu.memory_space<vmem>>, %arg5: memref<1x128xf32, #tpu.memory_space<vmem>>, %arg6: memref<8x128xf32, #tpu.memory_space<vmem>>, %arg7: memref<8x128xf32, #tpu.memory_space<vmem>>) attributes {dimension_semantics = [#tpu.dimension_semantics<parallel>, #tpu.dimension_semantics<arbitrary>], iteration_bounds = array<i64: 2, 1>, scalar_prefetch = 0 : i64, scratch_operands = 0 : i64, tpu.core_type = #tpu.core_type<tc>, window_params = [{transform_indices = @transform_0, window_bounds = array<i64: 8, 128>}, {transform_indices = @transform_1, window_bounds = array<i64: 128, 128>}, {transform_indices = @transform_2, window_bounds = array<i64: 1, 128>}, {pipeline_mode = #tpu.pipeline_mode<synchronous>, transform_indices = @transform_3, window_bounds = array<i64: 1, 128>}, {transform_indices = @transform_4, window_bounds = array<i64: 8, 128>}, {transform_indices = @transform_5, window_bounds = array<i64: 8, 128>}]} {
    %c0_i32 = arith.constant 0 : i32
    %0 = arith.cmpi eq, %arg1, %c0_i32 : i32
    %1 = arith.extui %0 : i1 to i32
    %c0_i32_0 = arith.constant 0 : i32
    %2 = arith.cmpi ne, %1, %c0_i32_0 : i32
    scf.if %2 {
      %cst_16 = arith.constant 0.000000e+00 : f32
      %20 = vector.broadcast %cst_16 : f32 to vector<8x128xf32>
      %c0_17 = arith.constant 0 : index
      %c0_18 = arith.constant 0 : index
      %21 = vector.load %arg6[%c0_17, %c0_18] : memref<8x128xf32, #tpu.memory_space<vmem>>, vector<8x128xf32>
      tpu.vector_store %arg6[%c0_17, %c0_18], %20 {strides = array<i32>} : memref<8x128xf32, #tpu.memory_space<vmem>>, vector<8x128xf32>,
    } else {
    }
    %c0 = arith.constant 0 : index
    %c0_1 = arith.constant 0 : index
    %3 = vector.load %arg3[%c0, %c0_1] : memref<128x128xbf16, #tpu.memory_space<vmem>>, vector<128x128xbf16>
    %c0_2 = arith.constant 0 : index
    %c0_3 = arith.constant 0 : index
    %4 = vector.load %arg2[%c0_2, %c0_3] : memref<8x128xbf16, #tpu.memory_space<vmem>>, vector<8x128xbf16>
    %cst = arith.constant dense<0.000000e+00> : vector<8x128xf32>
    %5 = tpu.matmul %4, %3, %cst {dimension_numbers = #tpu.dot_dimension_numbers<[1], [0], [0], [1], [0, 0, 1, 1], [], []>} : vector<8x128xbf16>, vector<128x128xbf16>, vector<8x128xf32> -> vector<8x128xf32>
    %c0_4 = arith.constant 0 : index
    %c0_5 = arith.constant 0 : index
    %6 = vector.load %arg4[%c0_4, %c0_5] : memref<1x128xf32, #tpu.memory_space<vmem>>, vector<1x128xf32>
    %7 = vector.broadcast %6 : vector<1x128xf32> to vector<8x128xf32>
    %8 = arith.addf %5, %7 : vector<8x128xf32>
    %cst_6 = arith.constant 0.000000e+00 : f32
    %9 = vector.broadcast %cst_6 : f32 to vector<8x128xf32>
    %10 = arith.maximumf %8, %9 : vector<8x128xf32>
    %c0_7 = arith.constant 0 : index
    %c0_8 = arith.constant 0 : index
    %11 = vector.load %arg7[%c0_7, %c0_8] : memref<8x128xf32, #tpu.memory_space<vmem>>, vector<8x128xf32>
    tpu.vector_store %arg7[%c0_7, %c0_8], %10 {strides = array<i32>} : memref<8x128xf32, #tpu.memory_space<vmem>>, vector<8x128xf32>,
    %c0_9 = arith.constant 0 : index
    %c0_10 = arith.constant 0 : index
    %12 = vector.load %arg6[%c0_9, %c0_10] : memref<8x128xf32, #tpu.memory_space<vmem>>, vector<8x128xf32>
    %13 = arith.truncf %10 : vector<8x128xf32> to vector<8x128xbf16>
    %cst_11 = arith.constant dense<0.000000e+00> : vector<8x128xf32>
    %14 = tpu.matmul %13, %3, %cst_11 {dimension_numbers = #tpu.dot_dimension_numbers<[1], [1], [0], [0], [0, 0, 1, 0], [], []>} : vector<8x128xbf16>, vector<128x128xbf16>, vector<8x128xf32> -> vector<8x128xf32>
    %15 = arith.addf %12, %14 : vector<8x128xf32>
    %c0_12 = arith.constant 0 : index
    %c0_13 = arith.constant 0 : index
    %16 = vector.load %arg6[%c0_12, %c0_13] : memref<8x128xf32, #tpu.memory_space<vmem>>, vector<8x128xf32>
    tpu.vector_store %arg6[%c0_12, %c0_13], %15 {strides = array<i32>} : memref<8x128xf32, #tpu.memory_space<vmem>>, vector<8x128xf32>,
    %c0_i32_14 = arith.constant 0 : i32
    %17 = arith.cmpi eq, %arg1, %c0_i32_14 : i32
    %18 = arith.extui %17 : i1 to i32
    %c0_i32_15 = arith.constant 0 : i32
    %19 = arith.cmpi ne, %18, %c0_i32_15 : i32
    scf.if %19 {
      %c0_16 = arith.constant 0 : index
      %c0_17 = arith.constant 0 : index
      %20 = vector.load %arg6[%c0_16, %c0_17] : memref<8x128xf32, #tpu.memory_space<vmem>>, vector<8x128xf32>
      %c0_18 = arith.constant 0 : index
      %c0_19 = arith.constant 0 : index
      %21 = vector.load %arg5[%c0_18, %c0_19] : memref<1x128xf32, #tpu.memory_space<vmem>>, vector<1x128xf32>
      %22 = vector.broadcast %21 : vector<1x128xf32> to vector<8x128xf32>
      %23 = arith.addf %20, %22 : vector<8x128xf32>
      %c0_20 = arith.constant 0 : index
      %c0_21 = arith.constant 0 : index
      %24 = vector.load %arg6[%c0_20, %c0_21] : memref<8x128xf32, #tpu.memory_space<vmem>>, vector<8x128xf32>
      tpu.vector_store %arg6[%c0_20, %c0_21], %23 {strides = array<i32>} : memref<8x128xf32, #tpu.memory_space<vmem>>, vector<8x128xf32>,
    } else {
    }
    return
  }
  func.func @transform_0(%arg0: i32, %arg1: i32) -> (i32, i32) {
    %c0_i32 = arith.constant 0 : i32
    %c0_i32_0 = arith.constant 0 : i32
    return %arg0, %c0_i32 : i32, i32
  }
  func.func @transform_1(%arg0: i32, %arg1: i32) -> (i32, i32) {
    %c0_i32 = arith.constant 0 : i32
    %c0_i32_0 = arith.constant 0 : i32
    return %c0_i32, %arg1 : i32, i32
  }
  func.func @transform_2(%arg0: i32, %arg1: i32) -> (i32, i32) {
    %c0_i32 = arith.constant 0 : i32
    %c0_i32_0 = arith.constant 0 : i32
    return %c0_i32, %arg1 : i32, i32
  }
  func.func @transform_3(%arg0: i32, %arg1: i32) -> (i32, i32) {
    %c0_i32 = arith.constant 0 : i32
    %c0_i32_0 = arith.constant 0 : i32
    %c0_i32_1 = arith.constant 0 : i32
    return %c0_i32, %c0_i32_0 : i32, i32
  }
  func.func @transform_4(%arg0: i32, %arg1: i32) -> (i32, i32) {
    %c0_i32 = arith.constant 0 : i32
    %c0_i32_0 = arith.constant 0 : i32
    return %arg0, %c0_i32 : i32, i32
  }
  func.func @transform_5(%arg0: i32, %arg1: i32) -> (i32, i32) {
    %c0_i32 = arith.constant 0 : i32
    return %arg0, %arg1 : i32, i32
  }
}

</mosaic_0001>

<llo_original>
// kernel: tpu_custom_call.1
$region0: #{tpu_custom_call.1}
  #allocation0 [shape = 'u32[]', space=smem, size = 0x4, offset = 0x4, fixed_abs, tag = 'smem constant byte address 0x4 - core index']
  #allocation1 [shape = 'u32[72,128]{1,0:T(1,128)}', space=vmem, size = 0x9000, scoped, tag = 'internal scratch']
  %s0 = inlined_call_operand.hbm [shape: bf16[16,128], index: 0, kind: input, shape index: {}]
  %s1 = inlined_call_operand.hbm [shape: bf16[128,128], index: 1, kind: input, shape index: {}]
  %s2 = inlined_call_operand.vmem [shape: f32[1,128], index: 2, kind: input, shape index: {}]
  %s3 = inlined_call_operand.vmem [shape: f32[1,128], index: 3, kind: input, shape index: {}]
  %s4 = inlined_call_operand.hbm [shape: f32[16,128], index: 4, kind: output, shape index: {0}]
  %s5 = inlined_call_operand.hbm [shape: f32[16,128], index: 5, kind: output, shape index: {1}]
  %6 = xla_tuple %s4, %s5
  %s7 = sld [smem:[#allocation0]]
  $region73: #{tpu_custom_call.1} parent=0
    _
  %s9 = ssub.s32 1, %s7
  %s10 = scalar_select 0, %s9, %s7
  $region1: #{tpu_custom_call.1} parent=0
    #allocation2 [shape = 'u8[4096]{0}', space=vmem, size = 0x1000, scoped, tag = 'input window, operand 0']
    #allocation3 [shape = 's32[2]{0}', space=sflag, size = 0x8, scoped, tag = 'scoped memory for tpu_custom_call.1']
    #allocation4 [shape = 's32[2]{0}', space=sflag, size = 0x8, scoped, tag = 'scoped memory for tpu_custom_call.1']
    #allocation5 [shape = 'u8[32768]{0}', space=vmem, size = 0x8000, scoped, tag = 'input window, operand 1, single buffered']
    #allocation6 [shape = 's32[1]{0}', space=sflag, size = 0x4, scoped, tag = 'scoped memory for tpu_custom_call.1']
    #allocation7 [shape = 'u8[8192]{0}', space=vmem, size = 0x2000, scoped, tag = 'output window, operand 0']
    #allocation8 [shape = 'u8[8192]{0}', space=vmem, size = 0x2000, scoped, tag = 'output window, operand 1']
    #allocation9 [shape = 's32[2]{0}', space=sflag, size = 0x8, scoped, tag = 'scoped memory for tpu_custom_call.1']
    %11 = vsyncpa [#allocation3], 0
    %s12 = scalar_lea.sflag [#allocation3], 1
    %13 = vsyncpa %s12, 0
    %14 = vsyncpa [#allocation6], 0
    %15 = vsyncpa [#allocation4], 0
    %s16 = scalar_lea.sflag [#allocation4], 1
    %17 = vsyncpa %s16, 0
    %18 = vsyncpa [#allocation9], 0
    %s19 = scalar_lea.sflag [#allocation9], 1
    %20 = vsyncpa %s19, 0
    loop: start=0, step=1, limit=4
    $region2: #{tpu_custom_call.1} parent=1 // loop_pre_header
      _
    $region3: #{tpu_custom_call.1} parent=1 // loop_header
      %s22 = sphi 0, %s26
      %p23 = scmp.ge.s32.totalorder %s22, 4
      %s29 = sphi 0, %s41
      %s30 = sphi 0, %s37
      %s31 = sphi 0, %s29
      %s32 = sphi 0, %s30
      %s33 = sphi 0, %s31
      %s34 = sphi 0, %s32
      %s44 = sphi 0, %s46
      %s47 = sphi 0, %s44
      %s48 = sphi 0, %s47
      %s64 = sphi 0, %s48
      %s70 = sphi 0, %s72
      %s73 = sphi 0, %s70
      %s74 = sphi 0, %s73
      %s90 = sphi 0, %s74
      %s96 = sphi 0, %s98
      %s99 = sphi 0, %s96
      %s100 = sphi 0, %s99
      %s116 = sphi 0, %s100
      %s120 = sphi 0, %s120
      %s122 = sphi 0, %s120
      %s123 = sphi 0, %s122
      %s137 = sphi 0, %s123
      %s143 = sphi 0, %s145
      %s146 = sphi 0, %s143
      %s147 = sphi 0, %s146
      %s163 = sphi 0, %s147
      %s171 = sphi 0, %s173
      %s174 = sphi 0, %s171
      %s175 = sphi 0, %s174
      %s191 = sphi 0, %s175
    $region4: #{tpu_custom_call.1} parent=1 // loop_header_branch
      %25 = sbr.rel (%p23) target = $region8
    $region5: #{tpu_custom_call.1} parent=1 // loop_body
      %s27 = ssub.s32 %s22, 1
      %s28 = ssub.s32 %s22, 2
      %s35 = sadd.s32 1, %s30
      %p36 = scmp.ge.s32.totalorder %s35, 1
      %s37 = scalar_select %p36, 0, %s35
      %s38 = sadd.s32 1, %s29
      %s39 = scalar_select %p36, %s38, %s29
      %p40 = scmp.ge.s32.totalorder %s39, 2
      %s41 = scalar_select %p40, 0, %s39
      %s42 = ssub.s32 %s29, %s41
      %p43 = scmp.eq.s32.totalorder %s42, 0
      %s45 = sadd.s32 %s44, 1
      %s46 = scalar_select %p43, %s44, %s45
      %p49 = pneg %p43
      %p50 = scmp.eq.s32.totalorder %s22, 1
      %p51 = por %p49, %p50
      %p52 = scmp.ne.s32.totalorder %s44, %s47
      %p53 = scmp.eq.s32.totalorder %s22, 0
      %p54 = por %p52, %p53
      %p55 = scmp.ne.s32.totalorder %s44, %s47
      %p56 = scmp.eq.s32.totalorder %s27, 1
      %p57 = por %p55, %p56
      %p58 = scmp.ne.s32.totalorder %s47, %s48
      %p59 = scmp.eq.s32.totalorder %s27, 0
      %p60 = por %p58, %p59
      %p61 = scmp.ne.s32.totalorder %s47, %s48
      %p62 = scmp.eq.s32.totalorder %s28, 1
      %p63 = por %p61, %p62
      %p65 = scmp.ne.s32.totalorder %s48, %s64
      %p66 = scmp.eq.s32.totalorder %s28, 0
      %p67 = por %p65, %p66
      %s68 = ssub.s32 %s30, %s37
      %p69 = scmp.eq.s32.totalorder %s68, 0
      %s71 = sadd.s32 %s70, 1
      %s72 = scalar_select %p69, %s70, %s71
      %p75 = pneg %p69
      %p76 = scmp.eq.s32.totalorder %s22, 1
      %p77 = por %p75, %p76
      %p78 = scmp.ne.s32.totalorder %s70, %s73
      %p79 = scmp.eq.s32.totalorder %s22, 0
      %p80 = por %p78, %p79
      %p81 = scmp.ne.s32.totalorder %s70, %s73
      %p82 = scmp.eq.s32.totalorder %s27, 1
      %p83 = por %p81, %p82
      %p84 = scmp.ne.s32.totalorder %s73, %s74
      %p85 = scmp.eq.s32.totalorder %s27, 0
      %p86 = por %p84, %p85
      %p87 = scmp.ne.s32.totalorder %s73, %s74
      %p88 = scmp.eq.s32.totalorder %s28, 1
      %p89 = por %p87, %p88
      %p91 = scmp.ne.s32.totalorder %s74, %s90
      %p92 = scmp.eq.s32.totalorder %s28, 0
      %p93 = por %p91, %p92
      %s94 = ssub.s32 %s30, %s37
      %p95 = scmp.eq.s32.totalorder %s94, 0
      %s97 = sadd.s32 %s96, 1
      %s98 = scalar_select %p95, %s96, %s97
      %p101 = pneg %p95
      %p102 = scmp.eq.s32.totalorder %s22, 1
      %p103 = por %p101, %p102
      %p104 = scmp.ne.s32.totalorder %s96, %s99
      %p105 = scmp.eq.s32.totalorder %s22, 0
      %p106 = por %p104, %p105
      %p107 = scmp.ne.s32.totalorder %s96, %s99
      %p108 = scmp.eq.s32.totalorder %s27, 1
      %p109 = por %p107, %p108
      %p110 = scmp.ne.s32.totalorder %s99, %s100
      %p111 = scmp.eq.s32.totalorder %s27, 0
      %p112 = por %p110, %p111
      %p113 = scmp.ne.s32.totalorder %s99, %s100
      %p114 = scmp.eq.s32.totalorder %s28, 1
      %p115 = por %p113, %p114
      %p117 = scmp.ne.s32.totalorder %s100, %s116
      %p118 = scmp.eq.s32.totalorder %s28, 0
      %p119 = por %p117, %p118
      %s121 = sadd.s32 %s120, 1
      %p124 = scmp.eq.s32.totalorder %s22, 1
      %p125 = scmp.ne.s32.totalorder %s120, %s122
      %p126 = scmp.eq.s32.totalorder %s22, 0
      %p127 = por %p125, %p126
      %p128 = scmp.ne.s32.totalorder %s120, %s122
      %p129 = scmp.eq.s32.totalorder %s27, 1
      %p130 = por %p128, %p129
      %p131 = scmp.ne.s32.totalorder %s122, %s123
      %p132 = scmp.eq.s32.totalorder %s27, 0
      %p133 = por %p131, %p132
      %p134 = scmp.ne.s32.totalorder %s122, %s123
      %p135 = scmp.eq.s32.totalorder %s28, 1
      %p136 = por %p134, %p135
      %p138 = scmp.ne.s32.totalorder %s123, %s137
      %p139 = scmp.eq.s32.totalorder %s28, 0
      %p140 = por %p138, %p139
      %s141 = ssub.s32 %s29, %s41
      %p142 = scmp.eq.s32.totalorder %s141, 0
      %s144 = sadd.s32 %s143, 1
      %s145 = scalar_select %p142, %s143, %s144
      %p148 = pneg %p142
      %p149 = scmp.eq.s32.totalorder %s22, 1
      %p150 = por %p148, %p149
      %p151 = scmp.ne.s32.totalorder %s143, %s146
      %p152 = scmp.eq.s32.totalorder %s22, 0
      %p153 = por %p151, %p152
      %p154 = scmp.ne.s32.totalorder %s143, %s146
      %p155 = scmp.eq.s32.totalorder %s27, 1
      %p156 = por %p154, %p155
      %p157 = scmp.ne.s32.totalorder %s146, %s147
      %p158 = scmp.eq.s32.totalorder %s27, 0
      %p159 = por %p157, %p158
      %p160 = scmp.ne.s32.totalorder %s146, %s147
      %p161 = scmp.eq.s32.totalorder %s28, 1
      %p162 = por %p160, %p161
      %p164 = scmp.ne.s32.totalorder %s147, %s163
      %p165 = scmp.eq.s32.totalorder %s28, 0
      %p166 = por %p164, %p165
      %s167 = ssub.s32 %s29, %s41
      %s168 = ssub.s32 %s30, %s37
      %s169 = sor.u32 %s167, %s168
      %p170 = scmp.eq.s32.totalorder %s169, 0
      %s172 = sadd.s32 %s171, 1
      %s173 = scalar_select %p170, %s171, %s172
      %p176 = pneg %p170
      %p177 = scmp.eq.s32.totalorder %s22, 1
      %p178 = por %p176, %p177
      %p179 = scmp.ne.s32.totalorder %s171, %s174
      %p180 = scmp.eq.s32.totalorder %s22, 0
      %p181 = por %p179, %p180
      %p182 = scmp.ne.s32.totalorder %s171, %s174
      %p183 = scmp.eq.s32.totalorder %s27, 1
      %p184 = por %p182, %p183
      %p185 = scmp.ne.s32.totalorder %s174, %s175
      %p186 = scmp.eq.s32.totalorder %s27, 0
      %p187 = por %p185, %p186
      %p188 = scmp.ne.s32.totalorder %s174, %s175
      %p189 = scmp.eq.s32.totalorder %s28, 1
      %p190 = por %p188, %p189
      %p192 = scmp.ne.s32.totalorder %s175, %s191
      %p193 = scmp.eq.s32.totalorder %s28, 0
      %p194 = por %p192, %p193
      %p195 = scmp.le.s32.totalorder 1, %s22
      %p196 = scmp.lt.s32.totalorder %s22, 3
      %p197 = pnand %p195, %p196
      %p198 = pneg %p197
      // Predicated region
      $region9: #{tpu_custom_call.1} parent=5 // pred_check
        _
      $region10: #{tpu_custom_call.1} parent=5 // pred_check_branch
        %200 = sbr.rel (%p197) target = $region12
      $region11: #{tpu_custom_call.1} parent=5 // pred_region
        %s201 = ssub.s32 %s22, 1
        // Predicated region
        $region13: #{tpu_custom_call.1} parent=11 // pred_check
          %p202 = pneg %p86
        $region14: #{tpu_custom_call.1} parent=11 // pred_check_branch
          %204 = sbr.rel (%p202) target = $region16
        $region15: #{tpu_custom_call.1} parent=11 // pred_region
          %206 = vsyncadd [#allocation6], 0
          %s207 = smul.addr %s32, 4
          %s208 = scalar_lea.hbm %s1, %s207
          %s209 = sshll.u32 %s208, 4
          %s210 = int_to_ptr.hbm [resolvable:$true] %s209
          %s211 = sshll.u32 [#allocation5], 4
          %s212 = int_to_ptr.vmem [resolvable:$true] %s211
          %217 = dma.hbm_to_vmem [thread:$0]  %s210, 1024, %s212, [#allocation6], 64, 64, 4
        $region16: #{tpu_custom_call.1} parent=11 // pred_fallthru
          _
        // Predicated region
        $region17: #{tpu_custom_call.1} parent=11 // pred_check
          %p218 = pneg %p112
        $region18: #{tpu_custom_call.1} parent=11 // pred_check_branch
          %220 = sbr.rel (%p218) target = $region20
        $region19: #{tpu_custom_call.1} parent=11 // pred_region
          %p221 = scmp.lt.s32.totalorder %s32, 0
          %s222 = scalar_select %p221, %s32, 0
          %s223 = scalar_lea.vmem %s2, %s222
        $region20: #{tpu_custom_call.1} parent=11 // pred_fallthru
          _
        // Predicated region
        $region21: #{tpu_custom_call.1} parent=11 // pred_check
          %p224 = pneg %p133
        $region22: #{tpu_custom_call.1} parent=11 // pred_check_branch
          %226 = sbr.rel (%p224) target = $region24
        $region23: #{tpu_custom_call.1} parent=11 // pred_region
          _
        $region24: #{tpu_custom_call.1} parent=11 // pred_fallthru
          _
      $region12: #{tpu_custom_call.1} parent=5 // pred_fallthru
        _
      %p227 = scmp.lt.s32.totalorder %s22, 2
      // Predicated region
      $region25: #{tpu_custom_call.1} parent=5 // pred_check
        %p228 = pneg %p227
      $region26: #{tpu_custom_call.1} parent=5 // pred_check_branch
        %230 = sbr.rel (%p228) target = $region28
      $region27: #{tpu_custom_call.1} parent=5 // pred_region
        // Predicated region
        $region29: #{tpu_custom_call.1} parent=27 // pred_check
          %p231 = pneg %p54
        $region30: #{tpu_custom_call.1} parent=27 // pred_check_branch
          %233 = sbr.rel (%p231) target = $region32
        $region31: #{tpu_custom_call.1} parent=27 // pred_region
          %s234 = sand.u32 %s44, 1
          %s235 = scalar_lea.sflag [#allocation3], %s234
          %s236 = sand.u32 %s44, 1
          %s237 = smul.addr %s236, 4
          %s238 = scalar_lea.vmem [#allocation2], %s237
          %240 = vsyncadd %s235, 0
          %s241 = smul.addr %s29, 4
          %s242 = scalar_lea.hbm %s0, %s241
          %s244 = sshll.u32 %s242, 4
          %s245 = int_to_ptr.hbm [resolvable:$true] %s244
          %s246 = sshll.u32 %s238, 4
          %s247 = int_to_ptr.vmem [resolvable:$true] %s246
          %249 = dma.hbm_to_vmem [thread:$0]  %s245, 64, %s247, %s235
        $region32: #{tpu_custom_call.1} parent=27 // pred_fallthru
          _
      $region28: #{tpu_custom_call.1} parent=5 // pred_fallthru
        _
      %p250 = scmp.le.s32.totalorder 1, %s22
      %p251 = scmp.lt.s32.totalorder %s22, 3
      %p252 = pnand %p250, %p251
      %p253 = pneg %p252
      // Predicated region
      $region33: #{tpu_custom_call.1} parent=5 // pred_check
        _
      $region34: #{tpu_custom_call.1} parent=5 // pred_check_branch
        %255 = sbr.rel (%p252) target = $region36
      $region35: #{tpu_custom_call.1} parent=5 // pred_region
        %s256 = ssub.s32 %s22, 1
        %s257 = sand.u32 %s47, 1
        %s258 = scalar_lea.sflag [#allocation3], %s257
        %s259 = sand.u32 %s47, 1
        %s260 = smul.addr %s259, 4
        %s261 = scalar_lea.vmem [#allocation2], %s260
        // Predicated region
        $region37: #{tpu_custom_call.1} parent=35 // pred_check
          %p262 = pneg %p60
        $region38: #{tpu_custom_call.1} parent=35 // pred_check_branch
          %264 = sbr.rel (%p262) target = $region40
        $region39: #{tpu_custom_call.1} parent=35 // pred_region
          %266 = dma.done %s258, 64
        $region40: #{tpu_custom_call.1} parent=35 // pred_fallthru
          _
        // Predicated region
        $region41: #{tpu_custom_call.1} parent=35 // pred_check
          %p267 = pneg %p86
        $region42: #{tpu_custom_call.1} parent=35 // pred_check_branch
          %269 = sbr.rel (%p267) target = $region44
        $region43: #{tpu_custom_call.1} parent=35 // pred_region
          %271 = dma.done [#allocation6], 1024
        $region44: #{tpu_custom_call.1} parent=35 // pred_fallthru
          _
        %s272 = sand.u32 %s47, 1
        %s273 = scalar_lea.sflag [#allocation3], %s272
        %s274 = sand.u32 %s47, 1
        %s275 = smul.addr %s274, 4
        %s276 = scalar_lea.vmem [#allocation2], %s275
        %p277 = pneg %p60
        %p278 = pneg %p57
        %p279 = pneg %p86
        %p280 = pneg %p83
        %p281 = scmp.lt.s32.totalorder %s32, 0
        %s282 = scalar_select %p281, %s32, 0
        %s283 = scalar_lea.vmem %s2, %s282
        %p284 = pneg %p112
        %p285 = pneg %p109
        %p286 = pneg %p133
        %p287 = pneg %p130
        %p288 = pneg %p159
        %p289 = pneg %p156
        %s290 = sand.u32 %s146, 1
        %s291 = scalar_lea.sflag [#allocation4], %s290
        %s292 = sand.u32 %s146, 1
        %s293 = smul.addr %s292, 8
        %s294 = scalar_lea.vmem [#allocation7], %s293
        %p295 = pneg %p187
        %p296 = pneg %p184
        %s297 = sand.u32 %s174, 1
        %s298 = scalar_lea.sflag [#allocation9], %s297
        %s299 = sand.u32 %s174, 1
        %s300 = smul.addr %s299, 8
        %s301 = scalar_lea.vmem [#allocation8], %s300
        %p302 = scmp.lt.s32.totalorder %s32, 0
        %s303 = scalar_select %p302, %s32, 0
        %s304 = scalar_lea.vmem %s2, %s303
        %p305 = scmp.eq.s32.totalorder %s32, 0
        // Predicated region
        $region45: #{tpu_custom_call.1} parent=35 // pred_check
          %p306 = pneg %p305
        $region46: #{tpu_custom_call.1} parent=35 // pred_check_branch
          %308 = sbr.rel (%p306) target = $region48
        $region47: #{tpu_custom_call.1} parent=35 // pred_region
          %309 = vst [vmem:[%s294] sm:$0xff] 0.0
        $region48: #{tpu_custom_call.1} parent=35 // pred_fallthru
          _
        %v310 = vld [vmem:[#allocation5] sm:$0xf]
        %v311 = vld [vmem:[#allocation5 + $0x4] sm:$0xf]
        %v312 = vld [vmem:[#allocation5 + $0x8] sm:$0xf]
        %v313 = vld [vmem:[#allocation5 + $0xc] sm:$0xf]
        %v314 = vld [vmem:[#allocation5 + $0x10] sm:$0xf]
        %v315 = vld [vmem:[#allocation5 + $0x14] sm:$0xf]
        %v316 = vld [vmem:[#allocation5 + $0x18] sm:$0xf]
        %v317 = vld [vmem:[#allocation5 + $0x1c] sm:$0xf]
        %v318 = vld [vmem:[#allocation5 + $0x20] sm:$0xf]
        %v319 = vld [vmem:[#allocation5 + $0x24] sm:$0xf]
        %v320 = vld [vmem:[#allocation5 + $0x28] sm:$0xf]
        %v321 = vld [vmem:[#allocation5 + $0x2c] sm:$0xf]
        %v322 = vld [vmem:[#allocation5 + $0x30] sm:$0xf]
        %v323 = vld [vmem:[#allocation5 + $0x34] sm:$0xf]
        %v324 = vld [vmem:[#allocation5 + $0x38] sm:$0xf]
        %v325 = vld [vmem:[#allocation5 + $0x3c] sm:$0xf]
        %v326 = vld [vmem:[%s261] sm:$0xf]
        %v327 = vld [vmem:[%s304] sm:$0x1]
        %v329 = vperm.slane %v327, 0
        %v347 = vunpack.c.l.b16 %v310
        %v348 = vunpack.c.l.b16 %v311
        %v349 = vunpack.c.l.b16 %v312
        %v350 = vunpack.c.l.b16 %v313
        %v351 = vunpack.c.l.b16 %v314
        %v352 = vunpack.c.l.b16 %v315
        %v353 = vunpack.c.l.b16 %v316
        %v354 = vunpack.c.l.b16 %v317
        %v355 = vunpack.c.l.b16 %v318
        %v356 = vunpack.c.l.b16 %v319
        %v357 = vunpack.c.l.b16 %v320
        %v358 = vunpack.c.l.b16 %v321
        %v359 = vunpack.c.l.b16 %v322
        %v360 = vunpack.c.l.b16 %v323
        %v361 = vunpack.c.l.b16 %v324
        %v362 = vunpack.c.l.b16 %v325
        %v363 = vpack.c.b16 %v348, %v347
        %v364 = vpack.c.b16 %v350, %v349
        %v365 = vpack.c.b16 %v352, %v351
        %v366 = vpack.c.b16 %v354, %v353
        %v367 = vpack.c.b16 %v356, %v355
        %v368 = vpack.c.b16 %v358, %v357
        %v369 = vpack.c.b16 %v360, %v359
        %v370 = vpack.c.b16 %v362, %v361
        %379 = vmatpush.bf16.msra.mxu0 %v370
        %380 = vmatpush.bf16.msra.mxu0 %v369
        %381 = vmatpush.bf16.msra.mxu0 %v368
        %382 = vmatpush.bf16.msra.mxu0 %v367
        %383 = vmatpush.bf16.msra.mxu0 %v366
        %384 = vmatpush.bf16.msra.mxu0 %v365
        %385 = vmatpush.bf16.msra.mxu0 %v364
        %386 = vmatpush.bf16.msra.mxu0 %v363
        %387 = vmatmul.bf16.gmra.mxu0 %v326
        %v388 = vpop.f32.mrf.mxu0
        %v389 = vadd.f32 %v329, %v388
        %v390 = vpop.f32.mrf.mxu0
        %391 = vdwg.mxu0
        %v392 = vmax.f32 %v389, 0.0
        %393 = vst [vmem:[%s301] sm:$0xff] %v392
        %v394 = vld [vmem:[%s294] sm:$0xff]
        %v395 = vpack.c.bf16 %v392, %v392
        %396 = vmatpush.bf16.xpose.msra.mxu0 %v370
        %397 = vmatpush.bf16.xpose.msra.mxu0 %v369
        %398 = vmatpush.bf16.xpose.msra.mxu0 %v368
        %399 = vmatpush.bf16.xpose.msra.mxu0 %v367
        %400 = vmatpush.bf16.xpose.msra.mxu0 %v366
        %401 = vmatpush.bf16.xpose.msra.mxu0 %v365
        %402 = vmatpush.bf16.xpose.msra.mxu0 %v364
        %403 = vmatpush.bf16.xpose.msra.mxu0 %v363
        %404 = vmatmul.bf16.gmra.mxu0 %v395
        %v405 = vpop.f32.mrf.mxu0
        %v406 = vadd.f32 0.0, %v405
        %v407 = vpop.f32.mrf.mxu0
        %408 = vdwg.mxu0
        %v409 = vadd.f32 %v394, %v406
        %410 = vst [vmem:[%s294] sm:$0xff] %v409
        // Predicated region
        $region49: #{tpu_custom_call.1} parent=35 // pred_check
          %p411 = pneg %p305
        $region50: #{tpu_custom_call.1} parent=35 // pred_check_branch
          %413 = sbr.rel (%p411) target = $region52
        $region51: #{tpu_custom_call.1} parent=35 // pred_region
          %v414 = vld [vmem:[%s294] sm:$0xff]
          %v415 = vld [vmem:[%s3] sm:$0x1]
          %v417 = vperm.slane %v415, 0
          %v419 = vadd.f32 %v414, %v417
          %420 = vst [vmem:[%s294] sm:$0xff] %v419
        $region52: #{tpu_custom_call.1} parent=35 // pred_fallthru
          _
        %s421 = sand.u32 %s146, 1
        %s422 = scalar_lea.sflag [#allocation4], %s421
        %s423 = sand.u32 %s146, 1
        %s424 = smul.addr %s423, 8
        %s425 = scalar_lea.vmem [#allocation7], %s424
        %s426 = sand.u32 %s174, 1
        %s427 = scalar_lea.sflag [#allocation9], %s426
        %s428 = sand.u32 %s174, 1
        %s429 = smul.addr %s428, 8
        %s430 = scalar_lea.vmem [#allocation8], %s429
        // Predicated region
        $region53: #{tpu_custom_call.1} parent=35 // pred_check
          %p431 = pneg %p156
        $region54: #{tpu_custom_call.1} parent=35 // pred_check_branch
          %433 = sbr.rel (%p431) target = $region56
        $region55: #{tpu_custom_call.1} parent=35 // pred_region
          %435 = vsyncadd %s422, 0
          %s436 = smul.addr %s31, 8
          %s437 = scalar_lea.hbm %s4, %s436
          %s439 = sshll.u32 %s425, 4
          %s440 = int_to_ptr.vmem [resolvable:$true] %s439
          %s441 = sshll.u32 %s437, 4
          %s442 = int_to_ptr.hbm [resolvable:$true] %s441
          %444 = dma.vmem_to_hbm [thread:$0]  %s440, 128, %s442, %s422
        $region56: #{tpu_custom_call.1} parent=35 // pred_fallthru
          _
        // Predicated region
        $region57: #{tpu_custom_call.1} parent=35 // pred_check
          %p445 = pneg %p184
        $region58: #{tpu_custom_call.1} parent=35 // pred_check_branch
          %447 = sbr.rel (%p445) target = $region60
        $region59: #{tpu_custom_call.1} parent=35 // pred_region
          %449 = vsyncadd %s427, 0
          %s450 = sadd.s32 %s32, %s31
          %s451 = smul.addr %s450, 8
          %s452 = scalar_lea.hbm %s5, %s451
          %s454 = sshll.u32 %s430, 4
          %s455 = int_to_ptr.vmem [resolvable:$true] %s454
          %s456 = sshll.u32 %s452, 4
          %s457 = int_to_ptr.hbm [resolvable:$true] %s456
          %459 = dma.vmem_to_hbm [thread:$0]  %s455, 128, %s457, %s427
        $region60: #{tpu_custom_call.1} parent=35 // pred_fallthru
          _
      $region36: #{tpu_custom_call.1} parent=5 // pred_fallthru
        _
      %p460 = scmp.le.s32.totalorder 2, %s22
      // Predicated region
      $region61: #{tpu_custom_call.1} parent=5 // pred_check
        %p461 = pneg %p460
      $region62: #{tpu_custom_call.1} parent=5 // pred_check_branch
        %463 = sbr.rel (%p461) target = $region64
      $region63: #{tpu_custom_call.1} parent=5 // pred_region
        %s464 = ssub.s32 %s22, 2
        // Predicated region
        $region65: #{tpu_custom_call.1} parent=63 // pred_check
          %p465 = pneg %p162
        $region66: #{tpu_custom_call.1} parent=63 // pred_check_branch
          %467 = sbr.rel (%p465) target = $region68
        $region67: #{tpu_custom_call.1} parent=63 // pred_region
          %s468 = sand.u32 %s147, 1
          %s469 = scalar_lea.sflag [#allocation4], %s468
          %s470 = sand.u32 %s147, 1
          %s471 = smul.addr %s470, 8
          %s472 = scalar_lea.vmem [#allocation7], %s471
          %474 = dma.done %s469, 128
        $region68: #{tpu_custom_call.1} parent=63 // pred_fallthru
          _
        // Predicated region
        $region69: #{tpu_custom_call.1} parent=63 // pred_check
          %p475 = pneg %p190
        $region70: #{tpu_custom_call.1} parent=63 // pred_check_branch
          %477 = sbr.rel (%p475) target = $region72
        $region71: #{tpu_custom_call.1} parent=63 // pred_region
          %s478 = sand.u32 %s175, 1
          %s479 = scalar_lea.sflag [#allocation9], %s478
          %s480 = sand.u32 %s175, 1
          %s481 = smul.addr %s480, 8
          %s482 = scalar_lea.vmem [#allocation8], %s481
          %484 = dma.done %s479, 128
        $region72: #{tpu_custom_call.1} parent=63 // pred_fallthru
          _
      $region64: #{tpu_custom_call.1} parent=5 // pred_fallthru
        _
    $region6: #{tpu_custom_call.1} parent=1 // loop_footer
      %s26 = sadd.s32 1, %s22
    $region7: #{tpu_custom_call.1} parent=1 // loop_footer_branch
      %21 = sbr.rel target = $region3
    $region8: #{tpu_custom_call.1} parent=1 // loop_exit
      _
    %485 = vsyncpa [#allocation3], 1
    %s486 = scalar_lea.sflag [#allocation3], 1
    %487 = vsyncpa %s486, 1
    %488 = vsyncpa [#allocation6], 1
    %489 = vsyncpa [#allocation4], 1
    %s490 = scalar_lea.sflag [#allocation4], 1
    %491 = vsyncpa %s490, 1
    %492 = vsyncpa [#allocation9], 1
    %s493 = scalar_lea.sflag [#allocation9], 1
    %494 = vsyncpa %s493, 1

</llo_original>
